<compile_context>
chip_gen: v7x
topology: tpu7x:2x2x1
jax: 0.10.0
libtpu: 0.0.40
codegen_flags: <defaults>
</compile_context>

<pallas_src>
import jax
import jax.numpy as jnp
from jax.experimental import pallas as pl
from jax.experimental.pallas import tpu as pltpu


def masked_param_kernel(dense_ref, mask_ref, out_ref):
    # mask is 0/1 uint8 -> cmp+select on the VPU (cheaper than u8->f32
    # convert + multiply) and exactly equal to dense * mask.float().
    d = dense_ref[...]
    out_ref[...] = jnp.where(mask_ref[...] != 0, d, jnp.zeros_like(d)).astype(
        out_ref.dtype
    )


def _pick_tile_m(M, N, dense_itemsize, mask_itemsize, budget_bytes):
    """Largest row tile (multiple of 8, dividing M) whose double-buffered
    footprint (dense in + u8 mask in + dense out) fits the VMEM budget."""
    per_row = N * (2 * dense_itemsize + mask_itemsize)
    max_rows = budget_bytes // (2 * per_row)  # x2 for double buffering
    if max_rows >= M:
        return M  # whole array in one block
    t = max(8, (max_rows // 8) * 8)
    while t >= 8:
        if M % t == 0:
            return t
        t -= 8
    return 8


def structured_sparse_forward(dense, mask_u8, *, vmem_budget_bytes=32 * 1024 * 1024):
    """Pallas equivalent of StructuredSparseParameter.forward().

    dense  : [M, N] parameter values (output of self.dense()), f32 or bf16.
    mask_u8: [M, N] expanded 0/1 element mask (self.mask), uint8.
    returns: [M, N] == dense * mask.float(), dtype = dense.dtype.
    """
    M, N = dense.shape
    assert mask_u8.shape == dense.shape, "mask/param shape mismatch"

    tile_m = _pick_tile_m(
        M, N, dense.dtype.itemsize, mask_u8.dtype.itemsize, vmem_budget_bytes
    )

    if tile_m == M:
        # Single block: no grid, no pipeline overhead. Whole arrays land in VMEM.
        return pl.pallas_call(
            masked_param_kernel,
            out_shape=jax.ShapeDtypeStruct((M, N), dense.dtype),
        )(dense, mask_u8)

    # Large-parameter path: 1-D row grid with big, VMEM-budgeted tiles.
    assert M % tile_m == 0, "tile must divide rows"
    return pl.pallas_call(
        masked_param_kernel,
        out_shape=jax.ShapeDtypeStruct((M, N), dense.dtype),
        grid=(M // tile_m,),
        in_specs=[
            pl.BlockSpec((tile_m, N), lambda i: (i, 0)),
            pl.BlockSpec((tile_m, N), lambda i: (i, 0)),
        ],
        out_specs=pl.BlockSpec((tile_m, N), lambda i: (i, 0)),
        compiler_params=pltpu.CompilerParams(
            dimension_semantics=("parallel",),
            vmem_limit_bytes=64 * 1024 * 1024,
        ),
    )(dense, mask_u8)


# ----- glue / "module" setup in plain JAX -------------------------------------

def init_structured_sparse(key, shape):
    """Mimics StructuredSparseParameter.__init__ + init_params():
       dense parameter (normal init), group_mask filled with 1, expanded to
       `mask` via ElementGrouping (mask = group_mask.view(shape))."""
    dense = jax.random.normal(key, shape, dtype=jnp.float32)
    group_mask = jnp.ones((shape[0] * shape[1],), dtype=jnp.uint8)  # fill_(1)
    mask = group_mask.reshape(shape)                                # group_mask_expand
    return dense, group_mask, mask


def randomly_thin_to_group_sparsity(key, group_mask, shape, group_sparsity):
    """group_mask.bernoulli_(p=1 - group_sparsity); compute_mask_()."""
    keep = jax.random.bernoulli(key, p=1.0 - group_sparsity, shape=group_mask.shape)
    group_mask = keep.astype(jnp.uint8)
    mask = group_mask.reshape(shape)   # ElementGrouping.group_mask_expand
    return group_mask, mask

# TODO(synk): prune/grow/shuffle mask-update methods are host-side bookkeeping
# (argsort / sequential per-group loops); only forward() is the hot path
# implemented as a Pallas kernel.


if __name__ == "__main__":
    key = jax.random.PRNGKey(0)
    k_dense, k_mask = jax.random.split(key)

    SHAPE = (64, 128)  # (out_features, in_features)

    dense, group_mask, mask = init_structured_sparse(k_dense, SHAPE)
    # Exercise a non-trivial mask (like randomly_thin_to_group_sparsity(0.5)):
    group_mask, mask = randomly_thin_to_group_sparsity(k_mask, group_mask, SHAPE, 0.5)

    out = structured_sparse_forward(dense, mask)
    out = jax.block_until_ready(out)

    ref = dense * mask.astype(jnp.float32)
    assert out.shape == SHAPE and out.dtype == jnp.float32
    assert jnp.array_equal(out, ref), "mismatch vs reference"
    print("KERNEL_OK")
</pallas_src>

<mosaic_0001>
module attributes {stable_mosaic.version = 11 : i64} {
  func.func @masked_param_kernel(%arg0: memref<64x128xf32, #tpu.memory_space<vmem>>, %arg1: memref<64x128xi8, #tpu.memory_space<vmem>>, %arg2: memref<64x128xf32, #tpu.memory_space<vmem>>) attributes {dimension_semantics = [], scalar_prefetch = 0 : i64, scratch_operands = 0 : i64, tpu.core_type = #tpu.core_type<tc>} {
    %c0 = arith.constant 0 : index
    %c0_0 = arith.constant 0 : index
    %0 = vector.load %arg0[%c0, %c0_0] : memref<64x128xf32, #tpu.memory_space<vmem>>, vector<64x128xf32>
    %c0_1 = arith.constant 0 : index
    %c0_2 = arith.constant 0 : index
    %1 = vector.load %arg1[%c0_1, %c0_2] : memref<64x128xi8, #tpu.memory_space<vmem>>, vector<64x128xi8>
    %c0_i8 = arith.constant 0 : i8
    %2 = vector.broadcast %c0_i8 : i8 to vector<64x128xi8>
    %3 = arith.cmpi ne, %1, %2 : vector<64x128xi8>
    %cst = arith.constant 0.000000e+00 : f32
    %4 = vector.broadcast %cst : f32 to vector<64x128xf32>
    %5 = arith.select %3, %0, %4 : vector<64x128xi1>, vector<64x128xf32>
    %c0_3 = arith.constant 0 : index
    %c0_4 = arith.constant 0 : index
    %6 = vector.load %arg2[%c0_3, %c0_4] : memref<64x128xf32, #tpu.memory_space<vmem>>, vector<64x128xf32>
    tpu.vector_store %arg2[%c0_3, %c0_4], %5 {strides = array<i32>} : memref<64x128xf32, #tpu.memory_space<vmem>>, vector<64x128xf32>,
    return
  }
}

</mosaic_0001>

<llo_original>
// kernel: tpu_custom_call.1
$region0: #{tpu_custom_call.1}
  #allocation0 [shape = 'u32[]', space=smem, size = 0x4, offset = 0x4, fixed_abs, tag = 'smem constant byte address 0x4 - core index']
  #allocation1 [shape = 'u32[144,128]{1,0:T(1,128)}', space=vmem, size = 0x12000, scoped, tag = 'internal scratch']
  %s0 = inlined_call_operand.hbm [shape: f32[64,128], index: 0, kind: input, shape index: {}]
  %s1 = inlined_call_operand.hbm [shape: u8[64,128], index: 1, kind: input, shape index: {}]
  %s2 = inlined_call_operand.hbm [shape: f32[64,128], index: 2, kind: output, shape index: {}]
  %s3 = sld [smem:[#allocation0]]
  $region26: #{tpu_custom_call.1} parent=0
    _
  %s5 = ssub.s32 1, %s3
  %s6 = scalar_select 0, %s5, %s3
  $region1: #{tpu_custom_call.1} parent=0
    #allocation2 [shape = 'u8[32768]{0}', space=vmem, size = 0x8000, scoped, tag = 'input window, operand 0, single buffered']
    #allocation3 [shape = 's32[1]{0}', space=sflag, size = 0x4, scoped, tag = 'scoped memory for tpu_custom_call.1']
    #allocation4 [shape = 's32[1]{0}', space=sflag, size = 0x4, scoped, tag = 'scoped memory for tpu_custom_call.1']
    #allocation5 [shape = 'u8[8192]{0}', space=vmem, size = 0x2000, scoped, tag = 'input window, operand 1, single buffered']
    #allocation6 [shape = 's32[1]{0}', space=sflag, size = 0x4, scoped, tag = 'scoped memory for tpu_custom_call.1']
    #allocation7 [shape = 'u8[32768]{0}', space=vmem, size = 0x8000, scoped, tag = 'output window, operand 0, single buffered']
    %7 = vsyncpa [#allocation3], 0
    %8 = vsyncpa [#allocation6], 0
    %9 = vsyncpa [#allocation4], 0
    // Predicated region
    $region2: #{tpu_custom_call.1} parent=1 // pred_check
      _
    $region3: #{tpu_custom_call.1} parent=1 // pred_check_branch
      %11 = sbr.rel (0) target = $region5
    $region4: #{tpu_custom_call.1} parent=1 // pred_region
      %s13 = ssub.s32 1024, 1024
      %14 = vsyncadd [#allocation3], %s13
      %s15 = sshll.u32 [#allocation2], 4
      %s16 = int_to_ptr.vmem [resolvable:$true] %s15
      %21 = dma.hbm_to_vmem [thread:$0]  %s0, 1024, %s16, [#allocation3], 128, 128, 8
    $region5: #{tpu_custom_call.1} parent=1 // pred_fallthru
      _
    // Predicated region
    $region6: #{tpu_custom_call.1} parent=1 // pred_check
      _
    $region7: #{tpu_custom_call.1} parent=1 // pred_check_branch
      %23 = sbr.rel (0) target = $region9
    $region8: #{tpu_custom_call.1} parent=1 // pred_region
      %s25 = ssub.s32 256, 256
      %26 = vsyncadd [#allocation6], %s25
      %s27 = sshll.u32 [#allocation5], 4
      %s28 = int_to_ptr.vmem [resolvable:$true] %s27
      %33 = dma.hbm_to_vmem [thread:$0]  %s1, 256, %s28, [#allocation6], 128, 128, 8
    $region9: #{tpu_custom_call.1} parent=1 // pred_fallthru
      _
    // Predicated region
    $region10: #{tpu_custom_call.1} parent=1 // pred_check
      _
    $region11: #{tpu_custom_call.1} parent=1 // pred_check_branch
      %35 = sbr.rel (0) target = $region13
    $region12: #{tpu_custom_call.1} parent=1 // pred_region
      %36 = dma.done [#allocation3], 1024
    $region13: #{tpu_custom_call.1} parent=1 // pred_fallthru
      _
    // Predicated region
    $region14: #{tpu_custom_call.1} parent=1 // pred_check
      _
    $region15: #{tpu_custom_call.1} parent=1 // pred_check_branch
      %38 = sbr.rel (0) target = $region17
    $region16: #{tpu_custom_call.1} parent=1 // pred_region
      %39 = dma.done [#allocation6], 256
    $region17: #{tpu_custom_call.1} parent=1 // pred_fallthru
      _
    %v42 = vld [vmem:[#allocation2] sm:$0xff]
    %v43 = vld [vmem:[#allocation2 + $0x8] sm:$0xff]
    %v44 = vld [vmem:[#allocation2 + $0x10] sm:$0xff]
    %v45 = vld [vmem:[#allocation2 + $0x18] sm:$0xff]
    %v46 = vld [vmem:[#allocation2 + $0x20] sm:$0xff]
    %v47 = vld [vmem:[#allocation2 + $0x28] sm:$0xff]
    %v48 = vld [vmem:[#allocation2 + $0x30] sm:$0xff]
    %v49 = vld [vmem:[#allocation2 + $0x38] sm:$0xff]
    %v50 = vld [vmem:[#allocation5] sm:$0xff]
    %v51 = vld [vmem:[#allocation5 + $0x8] sm:$0xff]
    %vm52 = vnez %v50
    %vm53 = vnez %v51
    %v54 = vsel %vm52, 16843009, 0
    %v55 = vsel %vm53, 16843009, 0
    %v56 = vunpack.c.0.s8 %v54
    %v57 = vunpack.c.1.s8 %v54
    %v58 = vunpack.c.2.s8 %v54
    %v59 = vunpack.c.3.s8 %v54
    %v60 = vunpack.c.0.s8 %v55
    %v61 = vunpack.c.1.s8 %v55
    %v62 = vunpack.c.2.s8 %v55
    %v63 = vunpack.c.3.s8 %v55
    %v64 = vpack.c.b16 %v56, %v56
    %v65 = vpack.c.b8 %v64, %v64
    %v66 = vpack.c.b16 %v57, %v57
    %v67 = vpack.c.b8 %v66, %v66
    %v68 = vpack.c.b16 %v58, %v58
    %v69 = vpack.c.b8 %v68, %v68
    %v70 = vpack.c.b16 %v59, %v59
    %v71 = vpack.c.b8 %v70, %v70
    %v72 = vpack.c.b16 %v60, %v60
    %v73 = vpack.c.b8 %v72, %v72
    %v74 = vpack.c.b16 %v61, %v61
    %v75 = vpack.c.b8 %v74, %v74
    %v76 = vpack.c.b16 %v62, %v62
    %v77 = vpack.c.b8 %v76, %v76
    %v78 = vpack.c.b16 %v63, %v63
    %v79 = vpack.c.b8 %v78, %v78
    %vm80 = vnez %v65
    %vm81 = vnez %v67
    %vm82 = vnez %v69
    %vm83 = vnez %v71
    %vm84 = vnez %v73
    %vm85 = vnez %v75
    %vm86 = vnez %v77
    %vm87 = vnez %v79
    %v88 = vsel %vm80, 16843009, 0
    %v89 = vsel %vm81, 16843009, 0
    %v90 = vsel %vm82, 16843009, 0
    %v91 = vsel %vm83, 16843009, 0
    %v92 = vsel %vm84, 16843009, 0
    %v93 = vsel %vm85, 16843009, 0
    %v94 = vsel %vm86, 16843009, 0
    %v95 = vsel %vm87, 16843009, 0
    %v96 = vunpack.c.0.s8 %v88
    %v97 = vunpack.c.0.s8 %v89
    %v98 = vunpack.c.0.s8 %v90
    %v99 = vunpack.c.0.s8 %v91
    %v100 = vunpack.c.0.s8 %v92
    %v101 = vunpack.c.0.s8 %v93
    %v102 = vunpack.c.0.s8 %v94
    %v103 = vunpack.c.0.s8 %v95
    %vm104 = vcmp.ne.s32.totalorder %v96, 0
    %vm105 = vcmp.ne.s32.totalorder %v97, 0
    %vm106 = vcmp.ne.s32.totalorder %v98, 0
    %vm107 = vcmp.ne.s32.totalorder %v99, 0
    %vm108 = vcmp.ne.s32.totalorder %v100, 0
    %vm109 = vcmp.ne.s32.totalorder %v101, 0
    %vm110 = vcmp.ne.s32.totalorder %v102, 0
    %vm111 = vcmp.ne.s32.totalorder %v103, 0
    %v112 = vsel %vm104, %v42, 0.0
    %v113 = vsel %vm105, %v43, 0.0
    %v114 = vsel %vm106, %v44, 0.0
    %v115 = vsel %vm107, %v45, 0.0
    %v116 = vsel %vm108, %v46, 0.0
    %v117 = vsel %vm109, %v47, 0.0
    %v118 = vsel %vm110, %v48, 0.0
    %v119 = vsel %vm111, %v49, 0.0
    %120 = vst [vmem:[#allocation7] sm:$0xff] %v112
    %121 = vst [vmem:[#allocation7 + $0x8] sm:$0xff] %v113
    %122 = vst [vmem:[#allocation7 + $0x10] sm:$0xff] %v114
    %123 = vst [vmem:[#allocation7 + $0x18] sm:$0xff] %v115
    %124 = vst [vmem:[#allocation7 + $0x20] sm:$0xff] %v116
    %125 = vst [vmem:[#allocation7 + $0x28] sm:$0xff] %v117
    %126 = vst [vmem:[#allocation7 + $0x30] sm:$0xff] %v118
    %127 = vst [vmem:[#allocation7 + $0x38] sm:$0xff] %v119
    // Predicated region
    $region18: #{tpu_custom_call.1} parent=1 // pred_check
      _
    $region19: #{tpu_custom_call.1} parent=1 // pred_check_branch
      %129 = sbr.rel (0) target = $region21
    $region20: #{tpu_custom_call.1} parent=1 // pred_region
      %s131 = ssub.s32 1024, 1024
      %132 = vsyncadd [#allocation4], %s131
      %s133 = sshll.u32 [#allocation7], 4
      %s134 = int_to_ptr.vmem [resolvable:$true] %s133
      %139 = dma.vmem_to_hbm [thread:$0]  %s134, 1024, %s2, [#allocation4], 128, 128, 8
    $region21: #{tpu_custom_call.1} parent=1 // pred_fallthru
      _
    // Predicated region
    $region22: #{tpu_custom_call.1} parent=1 // pred_check
      _
    $region23: #{tpu_custom_call.1} parent=1 // pred_check_branch
      %141 = sbr.rel (0) target = $region25
    $region24: #{tpu_custom_call.1} parent=1 // pred_region
      %142 = dma.done [#allocation4], 1024
    $region25: #{tpu_custom_call.1} parent=1 // pred_fallthru
      _
    %143 = vsyncpa [#allocation3], 1
    %144 = vsyncpa [#allocation6], 1
    %145 = vsyncpa [#allocation4], 1

</llo_original>
